<compile_context>
chip_gen: v5e
topology: v5e:2x2
jax: 0.10.0
libtpu: 0.0.40
codegen_flags: <defaults>
</compile_context>

<pallas_src>
import jax
import jax.numpy as jnp
from jax.experimental import pallas as pl
from jax.experimental.pallas import tpu as pltpu


def _round_up(x, m):
    return ((x + m - 1) // m) * m


def actor_kernel(obs_ref,            # (TB, obs_dim)
                 w1_ref, b1_ref,     # trunk Linear
                 g_ref, beta_ref,    # trunk LayerNorm (gamma, beta)
                 w2_ref, b2_ref,     # policy Linear 1
                 w3_ref, b3_ref,     # policy Linear 2 (pixels branch)
                 w4_ref, b4_ref,     # policy Linear 3 (output head, lane-padded)
                 mu_ref):            # (TB, a_pad)
    wdt = w1_ref.dtype               # matmul operand dtype (f32 or bf16)
    x = obs_ref[...].astype(wdt)

    # trunk: Linear -> LayerNorm -> Tanh   (stats / elementwise kept in f32)
    h = jnp.dot(x, w1_ref[...], preferred_element_type=jnp.float32) + b1_ref[...]
    mean = jnp.mean(h, axis=-1, keepdims=True)
    c = h - mean
    var = jnp.mean(c * c, axis=-1, keepdims=True)
    # folded affine: x_hat * g + beta == c * (g * rsqrt(var + eps)) + beta
    h = jnp.tanh(c * (g_ref[...] * jax.lax.rsqrt(var + 1e-5)) + beta_ref[...])

    # policy: Linear -> ReLU -> Linear -> ReLU -> Linear -> Tanh
    z = jnp.dot(h.astype(wdt), w2_ref[...], preferred_element_type=jnp.float32) + b2_ref[...]
    z = jnp.maximum(z, 0.0)
    z = jnp.dot(z.astype(wdt), w3_ref[...], preferred_element_type=jnp.float32) + b3_ref[...]
    z = jnp.maximum(z, 0.0)
    mu = jnp.dot(z.astype(wdt), w4_ref[...], preferred_element_type=jnp.float32) + b4_ref[...]
    mu_ref[...] = jnp.tanh(mu)


def actor_forward(obs, params, std_scalar, *,
                  block_b=256,
                  weight_dtype=jnp.float32,
                  vmem_limit_bytes=32 * 1024 * 1024):
    """obs: (B, obs_dim) f32; params: dict of weights; std_scalar: python float.

    Returns (mu, std) -- the parameters of utils.TruncatedNormal(mu, std).
    """
    B, obs_dim = obs.shape
    feature_dim = params["w1"].shape[1]
    hidden_dim = params["w2"].shape[1]
    action_dim = params["w4"].shape[1]

    # Cast matmul weights (MXU operands); biases / LN params stay f32.
    w1 = params["w1"].astype(weight_dtype)
    w2 = params["w2"].astype(weight_dtype)
    w3 = params["w3"].astype(weight_dtype)

    # Lane-pad the output head to a multiple of 128 -> unmasked full-width stores.
    a_pad = _round_up(max(action_dim, 128), 128)
    w4 = jnp.zeros((hidden_dim, a_pad), weight_dtype).at[:, :action_dim].set(
        params["w4"].astype(weight_dtype))
    b4 = jnp.zeros((1, a_pad), jnp.float32).at[:, :action_dim].set(params["b4"])

    # Batch tile: multiple of 8 sublanes, capped by requested block size.
    tb = min(block_b, _round_up(B, 8))
    b_pad = _round_up(B, tb)
    obs_p = obs if b_pad == B else jnp.zeros((b_pad, obs_dim), obs.dtype).at[:B].set(obs)

    grid = (b_pad // tb,)

    def full_spec(arr):  # resident across the whole grid (constant block index)
        return pl.BlockSpec(arr.shape, lambda i: (0, 0))

    weights = (w1, params["b1"], params["gamma"], params["beta"],
               w2, params["b2"], w3, params["b3"], w4, b4)

    mu_pad = pl.pallas_call(
        actor_kernel,
        out_shape=jax.ShapeDtypeStruct((b_pad, a_pad), jnp.float32),
        grid=grid,
        in_specs=[pl.BlockSpec((tb, obs_dim), lambda i: (i, 0))]
                 + [full_spec(w) for w in weights],
        out_specs=pl.BlockSpec((tb, a_pad), lambda i: (i, 0)),
        compiler_params=pltpu.CompilerParams(
            dimension_semantics=("parallel",),
            vmem_limit_bytes=vmem_limit_bytes,
        ),
    )(obs_p, *weights)

    mu = mu_pad[:B, :action_dim]
    # std is a constant broadcast -- cheaper as a plain XLA fill than an extra
    # lane-sparse kernel output stream.
    std = jnp.full((B, action_dim), jnp.float32(std_scalar))
    return mu, std


def init_params(key, obs_dim, feature_dim, hidden_dim, action_dim):
    """Deterministic synthetic init (stand-in for utils.weight_init)."""
    ks = jax.random.split(key, 4)

    def lin(k, fan_in, fan_out):
        scale = 1.0 / jnp.sqrt(jnp.float32(fan_in))
        w = jax.random.uniform(k, (fan_in, fan_out), jnp.float32, -scale, scale)
        b = jnp.zeros((1, fan_out), jnp.float32)
        return w, b

    w1, b1 = lin(ks[0], obs_dim, feature_dim)
    w2, b2 = lin(ks[1], feature_dim, hidden_dim)
    w3, b3 = lin(ks[2], hidden_dim, hidden_dim)
    w4, b4 = lin(ks[3], hidden_dim, action_dim)
    return dict(
        w1=w1, b1=b1,
        gamma=jnp.ones((1, feature_dim), jnp.float32),
        beta=jnp.zeros((1, feature_dim), jnp.float32),
        w2=w2, b2=b2, w3=w3, b3=b3, w4=w4, b4=b4,
    )


def actor_reference(obs, params, std_scalar):
    h = obs @ params["w1"] + params["b1"]
    mean = h.mean(-1, keepdims=True)
    var = ((h - mean) ** 2).mean(-1, keepdims=True)
    h = (h - mean) / jnp.sqrt(var + 1e-5)
    h = jnp.tanh(h * params["gamma"] + params["beta"])
    z = jnp.maximum(h @ params["w2"] + params["b2"], 0.0)
    z = jnp.maximum(z @ params["w3"] + params["b3"], 0.0)
    mu = jnp.tanh(z @ params["w4"] + params["b4"])
    return mu, jnp.ones_like(mu) * std_scalar


if __name__ == "__main__":
    # obs_type='pixels': feature_dim kept as-is, extra hidden Linear+ReLU used.
    B, obs_dim, feature_dim, hidden_dim, action_dim = 8, 32, 16, 32, 8
    std_scalar = 0.2

    key = jax.random.PRNGKey(0)
    k_obs, k_par = jax.random.split(key)
    obs = jax.random.normal(k_obs, (B, obs_dim), jnp.float32)
    params = init_params(k_par, obs_dim, feature_dim, hidden_dim, action_dim)

    # f32 path (exact check against the reference)
    mu, std = actor_forward(obs, params, std_scalar)
    jax.block_until_ready((mu, std))
    mu_ref, std_ref = actor_reference(obs, params, std_scalar)
    assert mu.shape == (B, action_dim) and std.shape == (B, action_dim)
    assert jnp.allclose(mu, mu_ref, atol=1e-5, rtol=1e-5)
    assert jnp.allclose(std, std_ref, atol=1e-6)

    # Exercise the batch grid: multi-step pipeline + row padding (B=40, TB=16).
    B2 = 40
    obs2 = jax.random.normal(jax.random.PRNGKey(1), (B2, obs_dim), jnp.float32)
    mu2, std2 = actor_forward(obs2, params, std_scalar, block_b=16)
    jax.block_until_ready((mu2, std2))
    mu2_ref, _ = actor_reference(obs2, params, std_scalar)
    assert mu2.shape == (B2, action_dim) and std2.shape == (B2, action_dim)
    assert jnp.allclose(mu2, mu2_ref, atol=1e-5, rtol=1e-5)

    # bf16-weight fast path (halved weight HBM traffic, f32 MXU accumulation).
    mu3, _ = actor_forward(obs, params, std_scalar, weight_dtype=jnp.bfloat16)
    jax.block_until_ready(mu3)
    assert jnp.allclose(mu3, mu_ref, atol=5e-2)

    print("KERNEL_OK")
</pallas_src>

<mosaic_0001>
module attributes {stable_mosaic.version = 11 : i64} {
  func.func @actor_kernel(%arg0: i32, %arg1: memref<8x32xf32, #tpu.memory_space<vmem>>, %arg2: memref<32x16xf32, #tpu.memory_space<vmem>>, %arg3: memref<1x16xf32, #tpu.memory_space<vmem>>, %arg4: memref<1x16xf32, #tpu.memory_space<vmem>>, %arg5: memref<1x16xf32, #tpu.memory_space<vmem>>, %arg6: memref<16x32xf32, #tpu.memory_space<vmem>>, %arg7: memref<1x32xf32, #tpu.memory_space<vmem>>, %arg8: memref<32x32xf32, #tpu.memory_space<vmem>>, %arg9: memref<1x32xf32, #tpu.memory_space<vmem>>, %arg10: memref<32x128xf32, #tpu.memory_space<vmem>>, %arg11: memref<1x128xf32, #tpu.memory_space<vmem>>, %arg12: memref<8x128xf32, #tpu.memory_space<vmem>>) attributes {dimension_semantics = [#tpu.dimension_semantics<parallel>], iteration_bounds = array<i64: 1>, scalar_prefetch = 0 : i64, scratch_operands = 0 : i64, tpu.core_type = #tpu.core_type<tc>, window_params = [{transform_indices = @transform_0, window_bounds = array<i64: 8, 32>}, {pipeline_mode = #tpu.pipeline_mode<synchronous>, transform_indices = @transform_1, window_bounds = array<i64: 32, 16>}, {pipeline_mode = #tpu.pipeline_mode<synchronous>, transform_indices = @transform_2, window_bounds = array<i64: 1, 16>}, {pipeline_mode = #tpu.pipeline_mode<synchronous>, transform_indices = @transform_3, window_bounds = array<i64: 1, 16>}, {pipeline_mode = #tpu.pipeline_mode<synchronous>, transform_indices = @transform_4, window_bounds = array<i64: 1, 16>}, {pipeline_mode = #tpu.pipeline_mode<synchronous>, transform_indices = @transform_5, window_bounds = array<i64: 16, 32>}, {pipeline_mode = #tpu.pipeline_mode<synchronous>, transform_indices = @transform_6, window_bounds = array<i64: 1, 32>}, {pipeline_mode = #tpu.pipeline_mode<synchronous>, transform_indices = @transform_7, window_bounds = array<i64: 32, 32>}, {pipeline_mode = #tpu.pipeline_mode<synchronous>, transform_indices = @transform_8, window_bounds = array<i64: 1, 32>}, {pipeline_mode = #tpu.pipeline_mode<synchronous>, transform_indices = @transform_9, window_bounds = array<i64: 32, 128>}, {pipeline_mode = #tpu.pipeline_mode<synchronous>, transform_indices = @transform_10, window_bounds = array<i64: 1, 128>}, {transform_indices = @transform_11, window_bounds = array<i64: 8, 128>}]} {
    %c0 = arith.constant 0 : index
    %c0_0 = arith.constant 0 : index
    %0 = vector.load %arg1[%c0, %c0_0] : memref<8x32xf32, #tpu.memory_space<vmem>>, vector<8x32xf32>
    %c0_1 = arith.constant 0 : index
    %c0_2 = arith.constant 0 : index
    %1 = vector.load %arg2[%c0_1, %c0_2] : memref<32x16xf32, #tpu.memory_space<vmem>>, vector<32x16xf32>
    %cst = arith.constant dense<0.000000e+00> : vector<8x16xf32>
    %2 = tpu.matmul %0, %1, %cst {dimension_numbers = #tpu.dot_dimension_numbers<[1], [0], [0], [1], [0, 0, 1, 1], [], []>} : vector<8x32xf32>, vector<32x16xf32>, vector<8x16xf32> -> vector<8x16xf32>
    %c0_3 = arith.constant 0 : index
    %c0_4 = arith.constant 0 : index
    %3 = vector.load %arg3[%c0_3, %c0_4] : memref<1x16xf32, #tpu.memory_space<vmem>>, vector<1x16xf32>
    %4 = vector.broadcast %3 : vector<1x16xf32> to vector<8x16xf32>
    %5 = arith.addf %2, %4 : vector<8x16xf32>
    %cst_5 = arith.constant dense<0.000000e+00> : vector<8xf32>
    %6 = vector.multi_reduction <add>, %5, %cst_5 [1] : vector<8x16xf32> to vector<8xf32>
    %7 = vector.shape_cast %6 : vector<8xf32> to vector<8x1xf32>
    %cst_6 = arith.constant 1.600000e+01 : f32
    %8 = vector.broadcast %cst_6 : f32 to vector<8x1xf32>
    %9 = arith.divf %7, %8 : vector<8x1xf32>
    %10 = vector.broadcast %9 : vector<8x1xf32> to vector<8x16xf32>
    %11 = arith.subf %5, %10 : vector<8x16xf32>
    %12 = arith.mulf %11, %11 : vector<8x16xf32>
    %cst_7 = arith.constant dense<0.000000e+00> : vector<8xf32>
    %13 = vector.multi_reduction <add>, %12, %cst_7 [1] : vector<8x16xf32> to vector<8xf32>
    %14 = vector.shape_cast %13 : vector<8xf32> to vector<8x1xf32>
    %cst_8 = arith.constant 1.600000e+01 : f32
    %15 = vector.broadcast %cst_8 : f32 to vector<8x1xf32>
    %16 = arith.divf %14, %15 : vector<8x1xf32>
    %c0_9 = arith.constant 0 : index
    %c0_10 = arith.constant 0 : index
    %17 = vector.load %arg4[%c0_9, %c0_10] : memref<1x16xf32, #tpu.memory_space<vmem>>, vector<1x16xf32>
    %cst_11 = arith.constant 9.99999974E-6 : f32
    %18 = vector.broadcast %cst_11 : f32 to vector<8x1xf32>
    %19 = arith.addf %16, %18 : vector<8x1xf32>
    %20 = math.rsqrt %19 : vector<8x1xf32>
    %21 = vector.broadcast %17 : vector<1x16xf32> to vector<8x16xf32>
    %22 = vector.broadcast %20 : vector<8x1xf32> to vector<8x16xf32>
    %23 = arith.mulf %21, %22 : vector<8x16xf32>
    %24 = arith.mulf %11, %23 : vector<8x16xf32>
    %c0_12 = arith.constant 0 : index
    %c0_13 = arith.constant 0 : index
    %25 = vector.load %arg5[%c0_12, %c0_13] : memref<1x16xf32, #tpu.memory_space<vmem>>, vector<1x16xf32>
    %26 = vector.broadcast %25 : vector<1x16xf32> to vector<8x16xf32>
    %27 = arith.addf %24, %26 : vector<8x16xf32>
    %28 = math.tanh %27 : vector<8x16xf32>
    %c0_14 = arith.constant 0 : index
    %c0_15 = arith.constant 0 : index
    %29 = vector.load %arg6[%c0_14, %c0_15] : memref<16x32xf32, #tpu.memory_space<vmem>>, vector<16x32xf32>
    %cst_16 = arith.constant dense<0.000000e+00> : vector<8x32xf32>
    %30 = tpu.matmul %28, %29, %cst_16 {dimension_numbers = #tpu.dot_dimension_numbers<[1], [0], [0], [1], [0, 0, 1, 1], [], []>} : vector<8x16xf32>, vector<16x32xf32>, vector<8x32xf32> -> vector<8x32xf32>
    %c0_17 = arith.constant 0 : index
    %c0_18 = arith.constant 0 : index
    %31 = vector.load %arg7[%c0_17, %c0_18] : memref<1x32xf32, #tpu.memory_space<vmem>>, vector<1x32xf32>
    %32 = vector.broadcast %31 : vector<1x32xf32> to vector<8x32xf32>
    %33 = arith.addf %30, %32 : vector<8x32xf32>
    %cst_19 = arith.constant 0.000000e+00 : f32
    %34 = vector.broadcast %cst_19 : f32 to vector<8x32xf32>
    %35 = arith.maximumf %33, %34 : vector<8x32xf32>
    %c0_20 = arith.constant 0 : index
    %c0_21 = arith.constant 0 : index
    %36 = vector.load %arg8[%c0_20, %c0_21] : memref<32x32xf32, #tpu.memory_space<vmem>>, vector<32x32xf32>
    %cst_22 = arith.constant dense<0.000000e+00> : vector<8x32xf32>
    %37 = tpu.matmul %35, %36, %cst_22 {dimension_numbers = #tpu.dot_dimension_numbers<[1], [0], [0], [1], [0, 0, 1, 1], [], []>} : vector<8x32xf32>, vector<32x32xf32>, vector<8x32xf32> -> vector<8x32xf32>
    %c0_23 = arith.constant 0 : index
    %c0_24 = arith.constant 0 : index
    %38 = vector.load %arg9[%c0_23, %c0_24] : memref<1x32xf32, #tpu.memory_space<vmem>>, vector<1x32xf32>
    %39 = vector.broadcast %38 : vector<1x32xf32> to vector<8x32xf32>
    %40 = arith.addf %37, %39 : vector<8x32xf32>
    %cst_25 = arith.constant 0.000000e+00 : f32
    %41 = vector.broadcast %cst_25 : f32 to vector<8x32xf32>
    %42 = arith.maximumf %40, %41 : vector<8x32xf32>
    %c0_26 = arith.constant 0 : index
    %c0_27 = arith.constant 0 : index
    %43 = vector.load %arg10[%c0_26, %c0_27] : memref<32x128xf32, #tpu.memory_space<vmem>>, vector<32x128xf32>
    %cst_28 = arith.constant dense<0.000000e+00> : vector<8x128xf32>
    %44 = tpu.matmul %42, %43, %cst_28 {dimension_numbers = #tpu.dot_dimension_numbers<[1], [0], [0], [1], [0, 0, 1, 1], [], []>} : vector<8x32xf32>, vector<32x128xf32>, vector<8x128xf32> -> vector<8x128xf32>
    %c0_29 = arith.constant 0 : index
    %c0_30 = arith.constant 0 : index
    %45 = vector.load %arg11[%c0_29, %c0_30] : memref<1x128xf32, #tpu.memory_space<vmem>>, vector<1x128xf32>
    %46 = vector.broadcast %45 : vector<1x128xf32> to vector<8x128xf32>
    %47 = arith.addf %44, %46 : vector<8x128xf32>
    %48 = math.tanh %47 : vector<8x128xf32>
    %c0_31 = arith.constant 0 : index
    %c0_32 = arith.constant 0 : index
    %49 = vector.load %arg12[%c0_31, %c0_32] : memref<8x128xf32, #tpu.memory_space<vmem>>, vector<8x128xf32>
    tpu.vector_store %arg12[%c0_31, %c0_32], %48 {strides = array<i32>} : memref<8x128xf32, #tpu.memory_space<vmem>>, vector<8x128xf32>,
    return
  }
  func.func @transform_0(%arg0: i32) -> (i32, i32) {
    %c0_i32 = arith.constant 0 : i32
    %c0_i32_0 = arith.constant 0 : i32
    return %arg0, %c0_i32 : i32, i32
  }
  func.func @transform_1(%arg0: i32) -> (i32, i32) {
    %c0_i32 = arith.constant 0 : i32
    %c0_i32_0 = arith.constant 0 : i32
    %c0_i32_1 = arith.constant 0 : i32
    return %c0_i32, %c0_i32_0 : i32, i32
  }
  func.func @transform_2(%arg0: i32) -> (i32, i32) {
    %c0_i32 = arith.constant 0 : i32
    %c0_i32_0 = arith.constant 0 : i32
    %c0_i32_1 = arith.constant 0 : i32
    return %c0_i32, %c0_i32_0 : i32, i32
  }
  func.func @transform_3(%arg0: i32) -> (i32, i32) {
    %c0_i32 = arith.constant 0 : i32
    %c0_i32_0 = arith.constant 0 : i32
    %c0_i32_1 = arith.constant 0 : i32
    return %c0_i32, %c0_i32_0 : i32, i32
  }
  func.func @transform_4(%arg0: i32) -> (i32, i32) {
    %c0_i32 = arith.constant 0 : i32
    %c0_i32_0 = arith.constant 0 : i32
    %c0_i32_1 = arith.constant 0 : i32
    return %c0_i32, %c0_i32_0 : i32, i32
  }
  func.func @transform_5(%arg0: i32) -> (i32, i32) {
    %c0_i32 = arith.constant 0 : i32
    %c0_i32_0 = arith.constant 0 : i32
    %c0_i32_1 = arith.constant 0 : i32
    return %c0_i32, %c0_i32_0 : i32, i32
  }
  func.func @transform_6(%arg0: i32) -> (i32, i32) {
    %c0_i32 = arith.constant 0 : i32
    %c0_i32_0 = arith.constant 0 : i32
    %c0_i32_1 = arith.constant 0 : i32
    return %c0_i32, %c0_i32_0 : i32, i32
  }
  func.func @transform_7(%arg0: i32) -> (i32, i32) {
    %c0_i32 = arith.constant 0 : i32
    %c0_i32_0 = arith.constant 0 : i32
    %c0_i32_1 = arith.constant 0 : i32
    return %c0_i32, %c0_i32_0 : i32, i32
  }
  func.func @transform_8(%arg0: i32) -> (i32, i32) {
    %c0_i32 = arith.constant 0 : i32
    %c0_i32_0 = arith.constant 0 : i32
    %c0_i32_1 = arith.constant 0 : i32
    return %c0_i32, %c0_i32_0 : i32, i32
  }
  func.func @transform_9(%arg0: i32) -> (i32, i32) {
    %c0_i32 = arith.constant 0 : i32
    %c0_i32_0 = arith.constant 0 : i32
    %c0_i32_1 = arith.constant 0 : i32
    return %c0_i32, %c0_i32_0 : i32, i32
  }
  func.func @transform_10(%arg0: i32) -> (i32, i32) {
    %c0_i32 = arith.constant 0 : i32
    %c0_i32_0 = arith.constant 0 : i32
    %c0_i32_1 = arith.constant 0 : i32
    return %c0_i32, %c0_i32_0 : i32, i32
  }
  func.func @transform_11(%arg0: i32) -> (i32, i32) {
    %c0_i32 = arith.constant 0 : i32
    %c0_i32_0 = arith.constant 0 : i32
    return %arg0, %c0_i32 : i32, i32
  }
}

</mosaic_0001>

<llo_original>
// kernel: tpu_custom_call.1
$region0: #{tpu_custom_call.1}
  #allocation0 [shape = 'u32[]', space=smem, size = 0x4, offset = 0x4, fixed_abs, tag = 'smem constant byte address 0x4 - core index']
  #allocation1 [shape = 'u32[72,128]{1,0:T(1,128)}', space=vmem, size = 0x9000, scoped, tag = 'internal scratch']
  %s0 = inlined_call_operand.hbm [shape: f32[8,32], index: 0, kind: input, shape index: {}]
  %s1 = inlined_call_operand.vmem [shape: f32[32,16], index: 1, kind: input, shape index: {}]
  %s2 = inlined_call_operand.vmem [shape: f32[1,16], index: 2, kind: input, shape index: {}]
  %s3 = inlined_call_operand.vmem [shape: f32[1,16], index: 3, kind: input, shape index: {}]
  %s4 = inlined_call_operand.vmem [shape: f32[1,16], index: 4, kind: input, shape index: {}]
  %s5 = inlined_call_operand.vmem [shape: f32[16,32], index: 5, kind: input, shape index: {}]
  %s6 = inlined_call_operand.vmem [shape: f32[1,32], index: 6, kind: input, shape index: {}]
  %s7 = inlined_call_operand.vmem [shape: f32[32,32], index: 7, kind: input, shape index: {}]
  %s8 = inlined_call_operand.vmem [shape: f32[1,32], index: 8, kind: input, shape index: {}]
  %s9 = inlined_call_operand.hbm [shape: f32[32,128], index: 9, kind: input, shape index: {}]
  %s10 = inlined_call_operand.vmem [shape: f32[1,128], index: 10, kind: input, shape index: {}]
  %s11 = inlined_call_operand.hbm [shape: f32[8,128], index: 11, kind: output, shape index: {}]
  %s12 = sld [smem:[#allocation0]]
  $region62: #{tpu_custom_call.1} parent=0
    _
  %s14 = ssub.s32 1, %s12
  %s15 = scalar_select 0, %s14, %s12
  $region1: #{tpu_custom_call.1} parent=0
    #allocation2 [shape = 'u8[4096]{0}', space=vmem, size = 0x1000, scoped, tag = 'input window, operand 0, single buffered']
    #allocation3 [shape = 's32[1]{0}', space=sflag, size = 0x4, scoped, tag = 'scoped memory for tpu_custom_call.1']
    #allocation4 [shape = 's32[1]{0}', space=sflag, size = 0x4, scoped, tag = 'scoped memory for tpu_custom_call.1']
    #allocation5 [shape = 'u8[16384]{0}', space=vmem, size = 0x4000, scoped, tag = 'input window, operand 9, single buffered']
    #allocation6 [shape = 's32[1]{0}', space=sflag, size = 0x4, scoped, tag = 'scoped memory for tpu_custom_call.1']
    #allocation7 [shape = 'u8[4096]{0}', space=vmem, size = 0x1000, scoped, tag = 'output window, operand 0, single buffered']
    %16 = vsyncpa [#allocation3], 0
    %17 = vsyncpa [#allocation6], 0
    %18 = vsyncpa [#allocation4], 0
    // Predicated region
    $region2: #{tpu_custom_call.1} parent=1 // pred_check
      _
    $region3: #{tpu_custom_call.1} parent=1 // pred_check_branch
      %20 = sbr.rel (0) target = $region5
    $region4: #{tpu_custom_call.1} parent=1 // pred_region
      %22 = vsyncadd [#allocation3], 0
      %s24 = sshll.u32 %s0, 4
      %s25 = int_to_ptr.hbm [resolvable:$true] %s24
      %s26 = sshll.u32 [#allocation2], 4
      %s27 = int_to_ptr.vmem [resolvable:$true] %s26
      %29 = dma.hbm_to_vmem [thread:$0]  %s25, 128, %s27, [#allocation3]
    $region5: #{tpu_custom_call.1} parent=1 // pred_fallthru
      _
    // Predicated region
    $region6: #{tpu_custom_call.1} parent=1 // pred_check
      _
    $region7: #{tpu_custom_call.1} parent=1 // pred_check_branch
      %31 = sbr.rel (0) target = $region9
    $region8: #{tpu_custom_call.1} parent=1 // pred_region
      _
    $region9: #{tpu_custom_call.1} parent=1 // pred_fallthru
      _
    // Predicated region
    $region10: #{tpu_custom_call.1} parent=1 // pred_check
      _
    $region11: #{tpu_custom_call.1} parent=1 // pred_check_branch
      %33 = sbr.rel (0) target = $region13
    $region12: #{tpu_custom_call.1} parent=1 // pred_region
      _
    $region13: #{tpu_custom_call.1} parent=1 // pred_fallthru
      _
    // Predicated region
    $region14: #{tpu_custom_call.1} parent=1 // pred_check
      _
    $region15: #{tpu_custom_call.1} parent=1 // pred_check_branch
      %35 = sbr.rel (0) target = $region17
    $region16: #{tpu_custom_call.1} parent=1 // pred_region
      _
    $region17: #{tpu_custom_call.1} parent=1 // pred_fallthru
      _
    // Predicated region
    $region18: #{tpu_custom_call.1} parent=1 // pred_check
      _
    $region19: #{tpu_custom_call.1} parent=1 // pred_check_branch
      %37 = sbr.rel (0) target = $region21
    $region20: #{tpu_custom_call.1} parent=1 // pred_region
      _
    $region21: #{tpu_custom_call.1} parent=1 // pred_fallthru
      _
    // Predicated region
    $region22: #{tpu_custom_call.1} parent=1 // pred_check
      _
    $region23: #{tpu_custom_call.1} parent=1 // pred_check_branch
      %39 = sbr.rel (0) target = $region25
    $region24: #{tpu_custom_call.1} parent=1 // pred_region
      _
    $region25: #{tpu_custom_call.1} parent=1 // pred_fallthru
      _
    // Predicated region
    $region26: #{tpu_custom_call.1} parent=1 // pred_check
      _
    $region27: #{tpu_custom_call.1} parent=1 // pred_check_branch
      %41 = sbr.rel (0) target = $region29
    $region28: #{tpu_custom_call.1} parent=1 // pred_region
      _
    $region29: #{tpu_custom_call.1} parent=1 // pred_fallthru
      _
    // Predicated region
    $region30: #{tpu_custom_call.1} parent=1 // pred_check
      _
    $region31: #{tpu_custom_call.1} parent=1 // pred_check_branch
      %43 = sbr.rel (0) target = $region33
    $region32: #{tpu_custom_call.1} parent=1 // pred_region
      _
    $region33: #{tpu_custom_call.1} parent=1 // pred_fallthru
      _
    // Predicated region
    $region34: #{tpu_custom_call.1} parent=1 // pred_check
      _
    $region35: #{tpu_custom_call.1} parent=1 // pred_check_branch
      %45 = sbr.rel (0) target = $region37
    $region36: #{tpu_custom_call.1} parent=1 // pred_region
      _
    $region37: #{tpu_custom_call.1} parent=1 // pred_fallthru
      _
    // Predicated region
    $region38: #{tpu_custom_call.1} parent=1 // pred_check
      _
    $region39: #{tpu_custom_call.1} parent=1 // pred_check_branch
      %47 = sbr.rel (0) target = $region41
    $region40: #{tpu_custom_call.1} parent=1 // pred_region
      %49 = vsyncadd [#allocation6], 0
      %s50 = sshll.u32 %s9, 4
      %s51 = int_to_ptr.hbm [resolvable:$true] %s50
      %s52 = sshll.u32 [#allocation5], 4
      %s53 = int_to_ptr.vmem [resolvable:$true] %s52
      %58 = dma.hbm_to_vmem [thread:$0]  %s51, 512, %s53, [#allocation6], 128, 128, 8
    $region41: #{tpu_custom_call.1} parent=1 // pred_fallthru
      _
    // Predicated region
    $region42: #{tpu_custom_call.1} parent=1 // pred_check
      _
    $region43: #{tpu_custom_call.1} parent=1 // pred_check_branch
      %60 = sbr.rel (0) target = $region45
    $region44: #{tpu_custom_call.1} parent=1 // pred_region
      _
    $region45: #{tpu_custom_call.1} parent=1 // pred_fallthru
      _
    // Predicated region
    $region46: #{tpu_custom_call.1} parent=1 // pred_check
      _
    $region47: #{tpu_custom_call.1} parent=1 // pred_check_branch
      %62 = sbr.rel (0) target = $region49
    $region48: #{tpu_custom_call.1} parent=1 // pred_region
      %64 = dma.done [#allocation3], 128
    $region49: #{tpu_custom_call.1} parent=1 // pred_fallthru
      _
    // Predicated region
    $region50: #{tpu_custom_call.1} parent=1 // pred_check
      _
    $region51: #{tpu_custom_call.1} parent=1 // pred_check_branch
      %66 = sbr.rel (0) target = $region53
    $region52: #{tpu_custom_call.1} parent=1 // pred_region
      %68 = dma.done [#allocation6], 512
    $region53: #{tpu_custom_call.1} parent=1 // pred_fallthru
      _
    %v69 = vld [vmem:[#allocation2] sm:$0xff]
    %v70 = vld [vmem:[%s1] sm:$0xff]
    %v71 = vld [vmem:[%s1 + $0x8] sm:$0xff]
    %v72 = vld [vmem:[%s1 + $0x10] sm:$0xff]
    %v73 = vld [vmem:[%s1 + $0x18] sm:$0xff]
    %v74 = vld [vmem:[%s2] sm:$0x1]
    %v76 = vperm.slane %v74, 0
    %vm78 = vcmask 261120
    %v80 = vsel %vm78, %v69, 0
    %82 = vmatpush.msra.mxu0 0.0
    %83 = vmatpush.msra.mxu0 0.0
    %84 = vmatpush.msra.mxu0 0.0
    %85 = vmatpush.msra.mxu0 0.0
    %86 = vmatpush.msra.mxu0 0.0
    %87 = vmatpush.msra.mxu0 0.0
    %88 = vmatpush.msra.mxu0 0.0
    %89 = vmatpush.msra.mxu0 0.0
    %90 = vmatpush.msra.mxu0 0.0
    %91 = vmatpush.msra.mxu0 0.0
    %92 = vmatpush.msra.mxu0 0.0
    %93 = vmatpush.msra.mxu0 0.0
    %94 = vmatpush.msra.mxu0 %v73
    %95 = vmatpush.msra.mxu0 %v72
    %96 = vmatpush.msra.mxu0 %v71
    %97 = vmatpush.msra.mxu0 %v70
    %98 = vmatmul.f32.gmra.mxu0 %v80
    %v99 = vpop.f32.mrf.mxu0
    %v100 = vadd.f32 %v76, %v99
    %101 = vdwg.mxu0
    %vm102 = vcmask 130048
    %v103 = vsel %vm102, %v100, 0.0
    %104 = vadd.xlane.f32.xlu0 %v103
    %v105 = vpop.xlane.xlu0 %104
    %v106 = vrcp.pop 16.0
    %v107 = vmul.f32 16.0, %v106
    %v108 = vsub.f32 1.0, %v107
    %v109 = vmul.f32 %v106, %v108
    %v110 = vadd.f32 %v106, %v109
    %vm111 = vweird.f32 %v106
    %v112 = vsel %vm111, %v106, %v110
    %v113 = vmul.f32 %v105, %v112
    %v114 = vsub.f32 %v100, %v113
    %v115 = vmul.f32 %v114, %v114
    %v116 = vsel %vm102, %v115, 0.0
    %117 = vadd.xlane.f32.xlu0 %v116
    %v118 = vpop.xlane.xlu0 %117
    %v119 = vmul.f32 %v118, %v112
    %v120 = vld [vmem:[%s3] sm:$0x1]
    %v121 = vadd.f32 %v119, 1e-05
    %v122 = vrsqrt.pop %v121
    %v123 = vmul.f32 %v122, %v121
    %v124 = vmul.f32 %v123, %v122
    %v125 = vmul.f32 0.5, %v124
    %v126 = vsub.f32 1.5, %v125
    %v127 = vmul.f32 %v122, %v126
    %vm128 = vweird.f32 %v121
    %vm129 = vweird.f32 %v122
    %vm130 = vmor %vm128, %vm129
    %v131 = vsel %vm130, %v122, %v127
    %v133 = vperm.slane %v120, 0
    %v135 = vmul.f32 %v133, %v131
    %v136 = vmul.f32 %v114, %v135
    %v137 = vld [vmem:[%s4] sm:$0x1]
    %v139 = vperm.slane %v137, 0
    %v141 = vadd.f32 %v136, %v139
    %v142 = vtanh.pop %v141
    %v143 = vld [vmem:[%s5] sm:$0xff]
    %v144 = vld [vmem:[%s5 + $0x8] sm:$0xff]
    %v145 = vld [vmem:[%s6] sm:$0x1]
    %v147 = vperm.slane %v145, 0
    %v150 = vsel %vm102, %v142, 0
    %152 = vmatpush.msra.mxu0 0.0
    %153 = vmatpush.msra.mxu0 0.0
    %154 = vmatpush.msra.mxu0 0.0
    %155 = vmatpush.msra.mxu0 0.0
    %156 = vmatpush.msra.mxu0 0.0
    %157 = vmatpush.msra.mxu0 0.0
    %158 = vmatpush.msra.mxu0 0.0
    %159 = vmatpush.msra.mxu0 0.0
    %160 = vmatpush.msra.mxu0 0.0
    %161 = vmatpush.msra.mxu0 0.0
    %162 = vmatpush.msra.mxu0 0.0
    %163 = vmatpush.msra.mxu0 0.0
    %164 = vmatpush.msra.mxu0 0.0
    %165 = vmatpush.msra.mxu0 0.0
    %166 = vmatpush.msra.mxu0 %v144
    %167 = vmatpush.msra.mxu0 %v143
    %168 = vmatmul.f32.gmra.mxu0 %v150
    %v169 = vpop.f32.mrf.mxu0
    %v170 = vadd.f32 %v147, %v169
    %171 = vdwg.mxu0
    %v172 = vmax.f32 %v170, 0.0
    %v173 = vld [vmem:[%s7] sm:$0xff]
    %v174 = vld [vmem:[%s7 + $0x8] sm:$0xff]
    %v175 = vld [vmem:[%s7 + $0x10] sm:$0xff]
    %v176 = vld [vmem:[%s7 + $0x18] sm:$0xff]
    %v177 = vld [vmem:[%s8] sm:$0x1]
    %v179 = vperm.slane %v177, 0
    %v182 = vsel %vm78, %v172, 0
    %184 = vmatpush.msra.mxu0 0.0
    %185 = vmatpush.msra.mxu0 0.0
    %186 = vmatpush.msra.mxu0 0.0
    %187 = vmatpush.msra.mxu0 0.0
    %188 = vmatpush.msra.mxu0 0.0
    %189 = vmatpush.msra.mxu0 0.0
    %190 = vmatpush.msra.mxu0 0.0
    %191 = vmatpush.msra.mxu0 0.0
    %192 = vmatpush.msra.mxu0 0.0
    %193 = vmatpush.msra.mxu0 0.0
    %194 = vmatpush.msra.mxu0 0.0
    %195 = vmatpush.msra.mxu0 0.0
    %196 = vmatpush.msra.mxu0 %v176
    %197 = vmatpush.msra.mxu0 %v175
    %198 = vmatpush.msra.mxu0 %v174
    %199 = vmatpush.msra.mxu0 %v173
    %200 = vmatmul.f32.gmra.mxu0 %v182
    %v201 = vpop.f32.mrf.mxu0
    %v202 = vadd.f32 %v179, %v201
    %203 = vdwg.mxu0
    %v204 = vmax.f32 %v202, 0.0
    %v205 = vld [vmem:[#allocation5] sm:$0xff]
    %v206 = vld [vmem:[#allocation5 + $0x8] sm:$0xff]
    %v207 = vld [vmem:[#allocation5 + $0x10] sm:$0xff]
    %v208 = vld [vmem:[#allocation5 + $0x18] sm:$0xff]
    %v209 = vld [vmem:[%s10] sm:$0x1]
    %v211 = vperm.slane %v209, 0
    %v214 = vsel %vm78, %v204, 0
    %216 = vmatpush.msra.mxu0 0.0
    %217 = vmatpush.msra.mxu0 0.0
    %218 = vmatpush.msra.mxu0 0.0
    %219 = vmatpush.msra.mxu0 0.0
    %220 = vmatpush.msra.mxu0 0.0
    %221 = vmatpush.msra.mxu0 0.0
    %222 = vmatpush.msra.mxu0 0.0
    %223 = vmatpush.msra.mxu0 0.0
    %224 = vmatpush.msra.mxu0 0.0
    %225 = vmatpush.msra.mxu0 0.0
    %226 = vmatpush.msra.mxu0 0.0
    %227 = vmatpush.msra.mxu0 0.0
    %228 = vmatpush.msra.mxu0 %v208
    %229 = vmatpush.msra.mxu0 %v207
    %230 = vmatpush.msra.mxu0 %v206
    %231 = vmatpush.msra.mxu0 %v205
    %232 = vmatmul.f32.gmra.mxu0 %v214
    %v233 = vpop.f32.mrf.mxu0
    %v234 = vadd.f32 %v211, %v233
    %235 = vdwg.mxu0
    %v236 = vtanh.pop %v234
    %237 = vst [vmem:[#allocation7] sm:$0xff] %v236
    // Predicated region
    $region54: #{tpu_custom_call.1} parent=1 // pred_check
      _
    $region55: #{tpu_custom_call.1} parent=1 // pred_check_branch
      %239 = sbr.rel (0) target = $region57
    $region56: #{tpu_custom_call.1} parent=1 // pred_region
      %241 = vsyncadd [#allocation4], 0
      %s243 = sshll.u32 [#allocation7], 4
      %s244 = int_to_ptr.vmem [resolvable:$true] %s243
      %s245 = sshll.u32 %s11, 4
      %s246 = int_to_ptr.hbm [resolvable:$true] %s245
      %248 = dma.vmem_to_hbm [thread:$0]  %s244, 128, %s246, [#allocation4]
    $region57: #{tpu_custom_call.1} parent=1 // pred_fallthru
      _
    // Predicated region
    $region58: #{tpu_custom_call.1} parent=1 // pred_check
      _
    $region59: #{tpu_custom_call.1} parent=1 // pred_check_branch
      %250 = sbr.rel (0) target = $region61
    $region60: #{tpu_custom_call.1} parent=1 // pred_region
      %252 = dma.done [#allocation4], 128
    $region61: #{tpu_custom_call.1} parent=1 // pred_fallthru
      _
    %253 = vsyncpa [#allocation3], 1
    %254 = vsyncpa [#allocation6], 1
    %255 = vsyncpa [#allocation4], 1

</llo_original>
